<compile_context>
chip_gen: v5e
topology: v5e:2x2
jax: 0.10.0
libtpu: 0.0.40
codegen_flags: <defaults>
</compile_context>

<pallas_src>
import jax
import jax.numpy as jnp
from jax.experimental import pallas as pl
from jax.experimental.pallas import tpu as pltpu


def _conv_gelu_kernel(x_ref, w_ref, b_ref, o_ref):
    """One batch block per grid step.

    x_ref: (nb, Hout, K)        im2col LHS slab, K = KH*Cin*W        (VMEM)
    w_ref: (K, WCp)             Toeplitz-expanded weights            (VMEM, grid-invariant)
    b_ref: (1, WCp)             bias tiled over Wout (zero-padded)   (VMEM)
    o_ref: (nb, Hout, WCp)      lane-dense output tile
    """
    nb, hout, k = x_ref.shape
    wcp = o_ref.shape[2]

    # (nb, Hout, K) -> (nb*Hout, K): free when Hout % 8 == 0 (layout-preserving collapse).
    lhs = x_ref[...].reshape(nb * hout, k)

    # Single dense MXU matmul per step; bias added as one VALU pass over the slab.
    acc = jnp.dot(lhs, w_ref[...], preferred_element_type=jnp.float32)
    acc = acc + b_ref[...]

    # PyTorch nn.GELU() default is the exact erf formulation.
    y = 0.5 * acc * (1.0 + jax.lax.erf(acc * jnp.float32(0.7071067811865476)))
    o_ref[...] = y.reshape(nb, hout, wcp).astype(o_ref.dtype)


def _toeplitz_weights(weight_oihw, *, w_in, w_out, stride, pad):
    """Expand (Cout, Cin, KH, KW) conv weights into a (KH*Cin*W, Wout*Cout) slab.

    RHS[kh*Cin*W + ci*W + j, wo*Cout + c] = weight[c, ci, kh, j - wo*stride + pad]
    and zero where that kw index falls outside [0, KW) -- which also implements the
    W-direction zero padding (and W-stride) of the convolution.
    """
    cout, cin, kh_sz, kw_sz = weight_oihw.shape
    j = jnp.arange(w_in)
    wo = jnp.arange(w_out)
    kw = j[:, None] - wo[None, :] * stride + pad               # (W, Wout)
    valid = (kw >= 0) & (kw < kw_sz)
    kw_c = jnp.clip(kw, 0, kw_sz - 1)
    wt = jnp.transpose(weight_oihw, (2, 1, 3, 0))              # (KH, Cin, KW, Cout)
    gath = wt[:, :, kw_c, :]                                   # (KH, Cin, W, Wout, Cout)
    rhs = jnp.where(valid[None, None, :, :, None], gath, 0.0)
    return rhs.reshape(kh_sz * cin * w_in, w_out * cout)


def _im2col_rows(x_nchw, *, kh_sz, stride, pad, hout):
    """Build the (N, Hout, KH*Cin*W) LHS slab (H padding + H stride handled here)."""
    n, cin, _, w = x_nchw.shape
    xp = jnp.pad(x_nchw, ((0, 0), (0, 0), (pad, pad), (0, 0)))       # H-pad only
    h_idx = jnp.arange(hout)[:, None] * stride + jnp.arange(kh_sz)[None, :]  # (Hout, KH)
    rows = xp[:, :, h_idx, :]                                  # (N, Cin, Hout, KH, W)
    rows = jnp.transpose(rows, (0, 2, 3, 1, 4))                # (N, Hout, KH, Cin, W)
    return rows.reshape(n, hout, kh_sz * cin * w)


def basic_conv(x_nchw, weight_oihw, bias, *, kernel_size, stride):
    """BasicConv forward: Conv2d(padding=kernel_size//2, stride) + bias + exact GELU."""
    pad = kernel_size // 2
    n, cin, h, w = x_nchw.shape
    cout, _, kh, kw = weight_oihw.shape

    hout = (h + 2 * pad - kh) // stride + 1
    wout = (w + 2 * pad - kw) // stride + 1
    wc = wout * cout
    k_dim = kh * cin * w

    # Pad the output column dim to a multiple of 128 so every output store is an
    # unmasked, fully lane-dense vst (padded columns are sliced off in the wrapper).
    wcp = max(128, ((wc + 127) // 128) * 128)

    lhs = _im2col_rows(x_nchw, kh_sz=kh, stride=stride, pad=pad, hout=hout)
    rhs = _toeplitz_weights(weight_oihw, w_in=w, w_out=wout, stride=stride, pad=pad)
    b_tile = jnp.tile(bias, wout).reshape(1, wc)               # [wo*Cout + c] = bias[c]
    if wcp != wc:
        rhs = jnp.pad(rhs, ((0, 0), (0, wcp - wc)))
        b_tile = jnp.pad(b_tile, ((0, 0), (0, wcp - wc)))

    # 2-way parallel grid: both v7x TensorCores get work; on single-TC v5e/v6e this is
    # only one extra ~0.35us grid step.  Batch images within a step stack into the
    # matmul M dimension.
    n_steps = min(n, 2)
    nb = -(-n // n_steps)                                      # cdiv
    n_pad = nb * n_steps
    if n_pad != n:
        lhs = jnp.pad(lhs, ((0, n_pad - n), (0, 0), (0, 0)))

    elt = jnp.dtype(x_nchw.dtype).itemsize
    out_flat = pl.pallas_call(
        _conv_gelu_kernel,
        out_shape=jax.ShapeDtypeStruct((n_pad, hout, wcp), x_nchw.dtype),
        grid_spec=pltpu.PrefetchScalarGridSpec(
            num_scalar_prefetch=0,
            grid=(n_steps,),
            in_specs=[
                pl.BlockSpec((nb, hout, k_dim), lambda i: (i, 0, 0)),
                pl.BlockSpec((k_dim, wcp), lambda i: (0, 0)),
                pl.BlockSpec((1, wcp), lambda i: (0, 0)),
            ],
            out_specs=pl.BlockSpec((nb, hout, wcp), lambda i: (i, 0, 0)),
        ),
        compiler_params=pltpu.CompilerParams(
            dimension_semantics=("parallel",),
        ),
        cost_estimate=pl.CostEstimate(
            flops=2 * n_pad * hout * k_dim * wcp,
            transcendentals=0,  # exact-erf GELU lowers to a VALU polynomial, not EUP
            bytes_accessed=(lhs.size + rhs.size + b_tile.size
                            + n_pad * hout * wcp) * elt,
        ),
    )(lhs, rhs, b_tile)

    # (N, Hout, Wout*Cout) -> (N, Hout, Wout, Cout) is free; one transpose back to the
    # PyTorch NCHW output convention (drop it if the consumer accepts NHWC).
    out_nhwc = out_flat[:n, :, :wc].reshape(n, hout, wout, cout)
    return jnp.transpose(out_nhwc, (0, 3, 1, 2))


def _reference(x_nchw, weight_oihw, bias, *, kernel_size, stride):
    pad = kernel_size // 2
    y = jax.lax.conv_general_dilated(
        x_nchw, weight_oihw,
        window_strides=(stride, stride),
        padding=[(pad, pad), (pad, pad)],
        dimension_numbers=("NCHW", "OIHW", "NCHW"),
    )
    y = y + bias[None, :, None, None]
    return jax.nn.gelu(y, approximate=False)


if __name__ == "__main__":
    # BasicConv(in_channel=4, out_channel=8, kernel_size=3, stride=1,
    #           bias=True, norm=False, relu=True, transpose=False)
    N, CIN, H, W = 2, 4, 16, 16
    COUT, K, STRIDE = 8, 3, 1

    key = jax.random.PRNGKey(0)
    kx, kw_key, kb_key = jax.random.split(key, 3)

    x = jax.random.normal(kx, (N, CIN, H, W), dtype=jnp.float32)
    fan_in = CIN * K * K
    bound = 1.0 / jnp.sqrt(float(fan_in))
    weight = jax.random.uniform(kw_key, (COUT, CIN, K, K),
                                minval=-bound, maxval=bound, dtype=jnp.float32)
    bias = jax.random.uniform(kb_key, (COUT,),
                              minval=-bound, maxval=bound, dtype=jnp.float32)

    out = basic_conv(x, weight, bias, kernel_size=K, stride=STRIDE)
    out = jax.block_until_ready(out)

    ref = jax.block_until_ready(
        _reference(x, weight, bias, kernel_size=K, stride=STRIDE))
    assert out.shape == (N, COUT, H, W), out.shape
    assert jnp.allclose(out, ref, atol=1e-4, rtol=1e-4), \
        float(jnp.max(jnp.abs(out - ref)))

    print("KERNEL_OK")
</pallas_src>

<mosaic_0001>
module attributes {stable_mosaic.version = 11 : i64} {
  func.func @_conv_gelu_kernel(%arg0: i32, %arg1: memref<1x16x192xf32, #tpu.memory_space<vmem>>, %arg2: memref<192x128xf32, #tpu.memory_space<vmem>>, %arg3: memref<1x128xf32, #tpu.memory_space<vmem>>, %arg4: memref<1x16x128xf32, #tpu.memory_space<vmem>>) attributes {dimension_semantics = [#tpu.dimension_semantics<parallel>], iteration_bounds = array<i64: 2>, scalar_prefetch = 0 : i64, scratch_operands = 0 : i64, tpu.core_type = #tpu.core_type<tc>, window_params = [{transform_indices = @transform_0, window_bounds = array<i64: 1, 16, 192>}, {pipeline_mode = #tpu.pipeline_mode<synchronous>, transform_indices = @transform_1, window_bounds = array<i64: 192, 128>}, {pipeline_mode = #tpu.pipeline_mode<synchronous>, transform_indices = @transform_2, window_bounds = array<i64: 1, 128>}, {transform_indices = @transform_3, window_bounds = array<i64: 1, 16, 128>}]} {
    %c0 = arith.constant 0 : index
    %c0_0 = arith.constant 0 : index
    %c0_1 = arith.constant 0 : index
    %0 = vector.load %arg1[%c0, %c0_0, %c0_1] : memref<1x16x192xf32, #tpu.memory_space<vmem>>, vector<1x16x192xf32>
    %1 = vector.shape_cast %0 : vector<1x16x192xf32> to vector<16x192xf32>
    %c0_2 = arith.constant 0 : index
    %c0_3 = arith.constant 0 : index
    %2 = vector.load %arg2[%c0_2, %c0_3] : memref<192x128xf32, #tpu.memory_space<vmem>>, vector<192x128xf32>
    %cst = arith.constant dense<0.000000e+00> : vector<16x128xf32>
    %3 = tpu.matmul %1, %2, %cst {dimension_numbers = #tpu.dot_dimension_numbers<[1], [0], [0], [1], [0, 0, 1, 1], [], []>} : vector<16x192xf32>, vector<192x128xf32>, vector<16x128xf32> -> vector<16x128xf32>
    %c0_4 = arith.constant 0 : index
    %c0_5 = arith.constant 0 : index
    %4 = vector.load %arg3[%c0_4, %c0_5] : memref<1x128xf32, #tpu.memory_space<vmem>>, vector<1x128xf32>
    %5 = vector.broadcast %4 : vector<1x128xf32> to vector<16x128xf32>
    %6 = arith.addf %3, %5 : vector<16x128xf32>
    %cst_6 = arith.constant 5.000000e-01 : f32
    %7 = vector.broadcast %cst_6 : f32 to vector<16x128xf32>
    %8 = arith.mulf %7, %6 : vector<16x128xf32>
    %cst_7 = arith.constant 0.707106769 : f32
    %9 = vector.broadcast %cst_7 : f32 to vector<16x128xf32>
    %10 = arith.mulf %6, %9 : vector<16x128xf32>
    %11 = math.erf %10 : vector<16x128xf32>
    %cst_8 = arith.constant 1.000000e+00 : f32
    %12 = vector.broadcast %cst_8 : f32 to vector<16x128xf32>
    %13 = arith.addf %12, %11 : vector<16x128xf32>
    %14 = arith.mulf %8, %13 : vector<16x128xf32>
    %15 = vector.shape_cast %14 : vector<16x128xf32> to vector<1x16x128xf32>
    %c0_9 = arith.constant 0 : index
    %c0_10 = arith.constant 0 : index
    %c0_11 = arith.constant 0 : index
    %16 = vector.load %arg4[%c0_9, %c0_10, %c0_11] : memref<1x16x128xf32, #tpu.memory_space<vmem>>, vector<1x16x128xf32>
    tpu.vector_store %arg4[%c0_9, %c0_10, %c0_11], %15 {strides = array<i32>} : memref<1x16x128xf32, #tpu.memory_space<vmem>>, vector<1x16x128xf32>,
    return
  }
  func.func @transform_0(%arg0: i32) -> (i32, i32, i32) {
    %c0_i32 = arith.constant 0 : i32
    %c0_i32_0 = arith.constant 0 : i32
    %c0_i32_1 = arith.constant 0 : i32
    return %arg0, %c0_i32, %c0_i32_0 : i32, i32, i32
  }
  func.func @transform_1(%arg0: i32) -> (i32, i32) {
    %c0_i32 = arith.constant 0 : i32
    %c0_i32_0 = arith.constant 0 : i32
    %c0_i32_1 = arith.constant 0 : i32
    return %c0_i32, %c0_i32_0 : i32, i32
  }
  func.func @transform_2(%arg0: i32) -> (i32, i32) {
    %c0_i32 = arith.constant 0 : i32
    %c0_i32_0 = arith.constant 0 : i32
    %c0_i32_1 = arith.constant 0 : i32
    return %c0_i32, %c0_i32_0 : i32, i32
  }
  func.func @transform_3(%arg0: i32) -> (i32, i32, i32) {
    %c0_i32 = arith.constant 0 : i32
    %c0_i32_0 = arith.constant 0 : i32
    %c0_i32_1 = arith.constant 0 : i32
    return %arg0, %c0_i32, %c0_i32_0 : i32, i32, i32
  }
}

</mosaic_0001>

<llo_original>
// kernel: tpu_custom_call.1
$region0: #{tpu_custom_call.1}
  #allocation0 [shape = 'u32[]', space=smem, size = 0x4, offset = 0x4, fixed_abs, tag = 'smem constant byte address 0x4 - core index']
  #allocation1 [shape = 'u32[72,128]{1,0:T(1,128)}', space=vmem, size = 0x9000, scoped, tag = 'internal scratch']
  %s0 = inlined_call_operand.hbm [shape: f32[2,16,192], index: 0, kind: input, shape index: {}]
  %s1 = inlined_call_operand.hbm [shape: f32[192,128], index: 1, kind: input, shape index: {}]
  %s2 = inlined_call_operand.vmem [shape: f32[1,128], index: 2, kind: input, shape index: {}]
  %s3 = inlined_call_operand.hbm [shape: f32[2,16,128], index: 3, kind: output, shape index: {}]
  %s4 = sld [smem:[#allocation0]]
  $region53: #{tpu_custom_call.1} parent=0
    _
  %s6 = ssub.s32 1, %s4
  %s7 = scalar_select 0, %s6, %s4
  $region1: #{tpu_custom_call.1} parent=0
    #allocation2 [shape = 'u8[32768]{0}', space=vmem, size = 0x8000, scoped, tag = 'input window, operand 0']
    #allocation3 [shape = 's32[2]{0}', space=sflag, size = 0x8, scoped, tag = 'scoped memory for tpu_custom_call.1']
    #allocation4 [shape = 's32[2]{0}', space=sflag, size = 0x8, scoped, tag = 'scoped memory for tpu_custom_call.1']
    #allocation5 [shape = 'u8[98304]{0}', space=vmem, size = 0x18000, scoped, tag = 'input window, operand 1, single buffered']
    #allocation6 [shape = 's32[1]{0}', space=sflag, size = 0x4, scoped, tag = 'scoped memory for tpu_custom_call.1']
    #allocation7 [shape = 'u8[16384]{0}', space=vmem, size = 0x4000, scoped, tag = 'output window, operand 0']
    %8 = vsyncpa [#allocation3], 0
    %s9 = scalar_lea.sflag [#allocation3], 1
    %10 = vsyncpa %s9, 0
    %11 = vsyncpa [#allocation6], 0
    %12 = vsyncpa [#allocation4], 0
    %s13 = scalar_lea.sflag [#allocation4], 1
    %14 = vsyncpa %s13, 0
    loop: start=0, step=1, limit=4
    $region2: #{tpu_custom_call.1} parent=1 // loop_pre_header
      _
    $region3: #{tpu_custom_call.1} parent=1 // loop_header
      %s16 = sphi 0, %s20
      %p17 = scmp.ge.s32.totalorder %s16, 4
      %s26 = sphi 0, %s28
      %s29 = sphi 0, %s26
      %s30 = sphi 0, %s29
      %s46 = sphi 0, %s30
      %s50 = sphi 0, %s50
      %s52 = sphi 0, %s50
      %s53 = sphi 0, %s52
      %s67 = sphi 0, %s53
      %s71 = sphi 0, %s71
      %s73 = sphi 0, %s71
      %s74 = sphi 0, %s73
      %s88 = sphi 0, %s74
      %s94 = sphi 0, %s96
      %s97 = sphi 0, %s94
      %s98 = sphi 0, %s97
      %s114 = sphi 0, %s98
    $region4: #{tpu_custom_call.1} parent=1 // loop_header_branch
      %19 = sbr.rel (%p17) target = $region8
    $region5: #{tpu_custom_call.1} parent=1 // loop_body
      %s21 = ssub.s32 %s16, 1
      %s22 = ssub.s32 %s16, 2
      %s23 = sadd.s32 %s16, 1
      %s24 = ssub.s32 %s16, %s23
      %p25 = scmp.eq.s32.totalorder %s24, 0
      %s27 = sadd.s32 %s26, 1
      %s28 = scalar_select %p25, %s26, %s27
      %p31 = pneg %p25
      %p32 = scmp.eq.s32.totalorder %s16, 1
      %p33 = por %p31, %p32
      %p34 = scmp.ne.s32.totalorder %s26, %s29
      %p35 = scmp.eq.s32.totalorder %s16, 0
      %p36 = por %p34, %p35
      %p37 = scmp.ne.s32.totalorder %s26, %s29
      %p38 = scmp.eq.s32.totalorder %s21, 1
      %p39 = por %p37, %p38
      %p40 = scmp.ne.s32.totalorder %s29, %s30
      %p41 = scmp.eq.s32.totalorder %s21, 0
      %p42 = por %p40, %p41
      %p43 = scmp.ne.s32.totalorder %s29, %s30
      %p44 = scmp.eq.s32.totalorder %s22, 1
      %p45 = por %p43, %p44
      %p47 = scmp.ne.s32.totalorder %s30, %s46
      %p48 = scmp.eq.s32.totalorder %s22, 0
      %p49 = por %p47, %p48
      %s51 = sadd.s32 %s50, 1
      %p54 = scmp.eq.s32.totalorder %s16, 1
      %p55 = scmp.ne.s32.totalorder %s50, %s52
      %p56 = scmp.eq.s32.totalorder %s16, 0
      %p57 = por %p55, %p56
      %p58 = scmp.ne.s32.totalorder %s50, %s52
      %p59 = scmp.eq.s32.totalorder %s21, 1
      %p60 = por %p58, %p59
      %p61 = scmp.ne.s32.totalorder %s52, %s53
      %p62 = scmp.eq.s32.totalorder %s21, 0
      %p63 = por %p61, %p62
      %p64 = scmp.ne.s32.totalorder %s52, %s53
      %p65 = scmp.eq.s32.totalorder %s22, 1
      %p66 = por %p64, %p65
      %p68 = scmp.ne.s32.totalorder %s53, %s67
      %p69 = scmp.eq.s32.totalorder %s22, 0
      %p70 = por %p68, %p69
      %s72 = sadd.s32 %s71, 1
      %p75 = scmp.eq.s32.totalorder %s16, 1
      %p76 = scmp.ne.s32.totalorder %s71, %s73
      %p77 = scmp.eq.s32.totalorder %s16, 0
      %p78 = por %p76, %p77
      %p79 = scmp.ne.s32.totalorder %s71, %s73
      %p80 = scmp.eq.s32.totalorder %s21, 1
      %p81 = por %p79, %p80
      %p82 = scmp.ne.s32.totalorder %s73, %s74
      %p83 = scmp.eq.s32.totalorder %s21, 0
      %p84 = por %p82, %p83
      %p85 = scmp.ne.s32.totalorder %s73, %s74
      %p86 = scmp.eq.s32.totalorder %s22, 1
      %p87 = por %p85, %p86
      %p89 = scmp.ne.s32.totalorder %s74, %s88
      %p90 = scmp.eq.s32.totalorder %s22, 0
      %p91 = por %p89, %p90
      %s92 = ssub.s32 %s16, %s23
      %p93 = scmp.eq.s32.totalorder %s92, 0
      %s95 = sadd.s32 %s94, 1
      %s96 = scalar_select %p93, %s94, %s95
      %p99 = pneg %p93
      %p100 = scmp.eq.s32.totalorder %s16, 1
      %p101 = por %p99, %p100
      %p102 = scmp.ne.s32.totalorder %s94, %s97
      %p103 = scmp.eq.s32.totalorder %s16, 0
      %p104 = por %p102, %p103
      %p105 = scmp.ne.s32.totalorder %s94, %s97
      %p106 = scmp.eq.s32.totalorder %s21, 1
      %p107 = por %p105, %p106
      %p108 = scmp.ne.s32.totalorder %s97, %s98
      %p109 = scmp.eq.s32.totalorder %s21, 0
      %p110 = por %p108, %p109
      %p111 = scmp.ne.s32.totalorder %s97, %s98
      %p112 = scmp.eq.s32.totalorder %s22, 1
      %p113 = por %p111, %p112
      %p115 = scmp.ne.s32.totalorder %s98, %s114
      %p116 = scmp.eq.s32.totalorder %s22, 0
      %p117 = por %p115, %p116
      %p118 = scmp.le.s32.totalorder 1, %s16
      %p119 = scmp.lt.s32.totalorder %s16, 3
      %p120 = pnand %p118, %p119
      %p121 = pneg %p120
      // Predicated region
      $region9: #{tpu_custom_call.1} parent=5 // pred_check
        _
      $region10: #{tpu_custom_call.1} parent=5 // pred_check_branch
        %123 = sbr.rel (%p120) target = $region12
      $region11: #{tpu_custom_call.1} parent=5 // pred_region
        %s124 = ssub.s32 %s16, 1
        // Predicated region
        $region13: #{tpu_custom_call.1} parent=11 // pred_check
          %p125 = pneg %p63
        $region14: #{tpu_custom_call.1} parent=11 // pred_check_branch
          %127 = sbr.rel (%p125) target = $region16
        $region15: #{tpu_custom_call.1} parent=11 // pred_region
          %129 = vsyncadd [#allocation6], 0
          %s130 = sshll.u32 %s1, 4
          %s131 = int_to_ptr.hbm [resolvable:$true] %s130
          %s132 = sshll.u32 [#allocation5], 4
          %s133 = int_to_ptr.vmem [resolvable:$true] %s132
          %138 = dma.hbm_to_vmem [thread:$0]  %s131, 3072, %s133, [#allocation6], 128, 128, 8
        $region16: #{tpu_custom_call.1} parent=11 // pred_fallthru
          _
        // Predicated region
        $region17: #{tpu_custom_call.1} parent=11 // pred_check
          %p139 = pneg %p84
        $region18: #{tpu_custom_call.1} parent=11 // pred_check_branch
          %141 = sbr.rel (%p139) target = $region20
        $region19: #{tpu_custom_call.1} parent=11 // pred_region
          _
        $region20: #{tpu_custom_call.1} parent=11 // pred_fallthru
          _
      $region12: #{tpu_custom_call.1} parent=5 // pred_fallthru
        _
      %p142 = scmp.lt.s32.totalorder %s16, 2
      // Predicated region
      $region21: #{tpu_custom_call.1} parent=5 // pred_check
        %p143 = pneg %p142
      $region22: #{tpu_custom_call.1} parent=5 // pred_check_branch
        %145 = sbr.rel (%p143) target = $region24
      $region23: #{tpu_custom_call.1} parent=5 // pred_region
        // Predicated region
        $region25: #{tpu_custom_call.1} parent=23 // pred_check
          %p146 = pneg %p36
        $region26: #{tpu_custom_call.1} parent=23 // pred_check_branch
          %148 = sbr.rel (%p146) target = $region28
        $region27: #{tpu_custom_call.1} parent=23 // pred_region
          %s149 = sand.u32 %s26, 1
          %s150 = scalar_lea.sflag [#allocation3], %s149
          %s151 = sand.u32 %s26, 1
          %s152 = smul.addr %s151, 32
          %s153 = scalar_lea.vmem [#allocation2], %s152
          %155 = vsyncadd %s150, 0
          %s156 = smul.addr %s16, 4
          %s157 = smul.addr %s156, 8
          %s158 = scalar_lea.hbm %s0, %s157
          %s159 = sshll.u32 %s158, 4
          %s160 = int_to_ptr.hbm [resolvable:$true] %s159
          %s161 = sshll.u32 %s153, 4
          %s162 = int_to_ptr.vmem [resolvable:$true] %s161
          %167 = dma.hbm_to_vmem [thread:$0]  %s160, 512, %s162, %s150, 256, 256, 16
        $region28: #{tpu_custom_call.1} parent=23 // pred_fallthru
          _
      $region24: #{tpu_custom_call.1} parent=5 // pred_fallthru
        _
      %p168 = scmp.le.s32.totalorder 1, %s16
      %p169 = scmp.lt.s32.totalorder %s16, 3
      %p170 = pnand %p168, %p169
      %p171 = pneg %p170
      // Predicated region
      $region29: #{tpu_custom_call.1} parent=5 // pred_check
        _
      $region30: #{tpu_custom_call.1} parent=5 // pred_check_branch
        %173 = sbr.rel (%p170) target = $region32
      $region31: #{tpu_custom_call.1} parent=5 // pred_region
        %s174 = ssub.s32 %s16, 1
        %s175 = sand.u32 %s29, 1
        %s176 = scalar_lea.sflag [#allocation3], %s175
        %s177 = sand.u32 %s29, 1
        %s178 = smul.addr %s177, 32
        %s179 = scalar_lea.vmem [#allocation2], %s178
        // Predicated region
        $region33: #{tpu_custom_call.1} parent=31 // pred_check
          %p180 = pneg %p42
        $region34: #{tpu_custom_call.1} parent=31 // pred_check_branch
          %182 = sbr.rel (%p180) target = $region36
        $region35: #{tpu_custom_call.1} parent=31 // pred_region
          %184 = dma.done %s176, 512
        $region36: #{tpu_custom_call.1} parent=31 // pred_fallthru
          _
        // Predicated region
        $region37: #{tpu_custom_call.1} parent=31 // pred_check
          %p185 = pneg %p63
        $region38: #{tpu_custom_call.1} parent=31 // pred_check_branch
          %187 = sbr.rel (%p185) target = $region40
        $region39: #{tpu_custom_call.1} parent=31 // pred_region
          %189 = dma.done [#allocation6], 3072
        $region40: #{tpu_custom_call.1} parent=31 // pred_fallthru
          _
        %s190 = sand.u32 %s29, 1
        %s191 = scalar_lea.sflag [#allocation3], %s190
        %s192 = sand.u32 %s29, 1
        %s193 = smul.addr %s192, 32
        %s194 = scalar_lea.vmem [#allocation2], %s193
        %p195 = pneg %p42
        %p196 = pneg %p39
        %p197 = pneg %p63
        %p198 = pneg %p60
        %p199 = pneg %p84
        %p200 = pneg %p81
        %p201 = pneg %p110
        %p202 = pneg %p107
        %s203 = sand.u32 %s97, 1
        %s204 = scalar_lea.sflag [#allocation4], %s203
        %s205 = sand.u32 %s97, 1
        %s206 = smul.addr %s205, 16
        %s207 = scalar_lea.vmem [#allocation7], %s206
        %v208 = vld [vmem:[%s179] sm:$0xff]
        %v209 = vld [vmem:[%s179 + $0x8] sm:$0xff]
        %v210 = vld [vmem:[%s179 + $0x10] sm:$0xff]
        %v211 = vld [vmem:[%s179 + $0x18] sm:$0xff]
        %v212 = vld [vmem:[#allocation5] sm:$0xff]
        %v213 = vld [vmem:[#allocation5 + $0x8] sm:$0xff]
        %v214 = vld [vmem:[#allocation5 + $0x10] sm:$0xff]
        %v215 = vld [vmem:[#allocation5 + $0x18] sm:$0xff]
        %v216 = vld [vmem:[#allocation5 + $0x20] sm:$0xff]
        %v217 = vld [vmem:[#allocation5 + $0x28] sm:$0xff]
        %v218 = vld [vmem:[#allocation5 + $0x30] sm:$0xff]
        %v219 = vld [vmem:[#allocation5 + $0x38] sm:$0xff]
        %v220 = vld [vmem:[#allocation5 + $0x40] sm:$0xff]
        %v221 = vld [vmem:[#allocation5 + $0x48] sm:$0xff]
        %v222 = vld [vmem:[#allocation5 + $0x50] sm:$0xff]
        %v223 = vld [vmem:[#allocation5 + $0x58] sm:$0xff]
        %v224 = vld [vmem:[#allocation5 + $0x60] sm:$0xff]
        %v225 = vld [vmem:[#allocation5 + $0x68] sm:$0xff]
        %v226 = vld [vmem:[#allocation5 + $0x70] sm:$0xff]
        %v227 = vld [vmem:[#allocation5 + $0x78] sm:$0xff]
        %v228 = vld [vmem:[#allocation5 + $0x80] sm:$0xff]
        %v229 = vld [vmem:[#allocation5 + $0x88] sm:$0xff]
        %v230 = vld [vmem:[#allocation5 + $0x90] sm:$0xff]
        %v231 = vld [vmem:[#allocation5 + $0x98] sm:$0xff]
        %v232 = vld [vmem:[#allocation5 + $0xa0] sm:$0xff]
        %v233 = vld [vmem:[#allocation5 + $0xa8] sm:$0xff]
        %v234 = vld [vmem:[#allocation5 + $0xb0] sm:$0xff]
        %v235 = vld [vmem:[#allocation5 + $0xb8] sm:$0xff]
        %v236 = vld [vmem:[%s2] sm:$0x1]
        %v238 = vperm.slane %v236, 0
        %vm240 = vcmask 523264
        %v242 = vsel %vm240, %v209, 0
        %v245 = vsel %vm240, %v211, 0
        %247 = vmatpush.msra.mxu0 %v227
        %248 = vmatpush.msra.mxu0 %v226
        %249 = vmatpush.msra.mxu0 %v225
        %250 = vmatpush.msra.mxu0 %v224
        %251 = vmatpush.msra.mxu0 %v223
        %252 = vmatpush.msra.mxu0 %v222
        %253 = vmatpush.msra.mxu0 %v221
        %254 = vmatpush.msra.mxu0 %v220
        %255 = vmatpush.msra.mxu0 %v219
        %256 = vmatpush.msra.mxu0 %v218
        %257 = vmatpush.msra.mxu0 %v217
        %258 = vmatpush.msra.mxu0 %v216
        %259 = vmatpush.msra.mxu0 %v215
        %260 = vmatpush.msra.mxu0 %v214
        %261 = vmatpush.msra.mxu0 %v213
        %262 = vmatpush.msra.mxu0 %v212
        %263 = vmatmul.f32.gmra.mxu0 %v208
        %v264 = vpop.f32.mrf.mxu0
        %v265 = vadd.f32 %v238, %v264
        %266 = vmatmul.f32.gmra.mxu0 %v210
        %v267 = vpop.f32.mrf.mxu0
        %v268 = vadd.f32 %v238, %v267
        %269 = vdwg.mxu0
        %270 = vmatpush.msra.mxu0 0.0
        %271 = vmatpush.msra.mxu0 0.0
        %272 = vmatpush.msra.mxu0 0.0
        %273 = vmatpush.msra.mxu0 0.0
        %274 = vmatpush.msra.mxu0 0.0
        %275 = vmatpush.msra.mxu0 0.0
        %276 = vmatpush.msra.mxu0 0.0
        %277 = vmatpush.msra.mxu0 0.0
        %278 = vmatpush.msra.mxu0 %v235
        %279 = vmatpush.msra.mxu0 %v234
        %280 = vmatpush.msra.mxu0 %v233
        %281 = vmatpush.msra.mxu0 %v232
        %282 = vmatpush.msra.mxu0 %v231
        %283 = vmatpush.msra.mxu0 %v230
        %284 = vmatpush.msra.mxu0 %v229
        %285 = vmatpush.msra.mxu0 %v228
        %286 = vmatmul.f32.gmra.mxu0 %v242
        %v287 = vpop.f32.mrf.mxu0
        %v288 = vadd.f32 %v265, %v287
        %289 = vmatmul.f32.gmra.mxu0 %v245
        %v290 = vpop.f32.mrf.mxu0
        %v291 = vadd.f32 %v268, %v290
        %292 = vdwg.mxu0
        %v293 = vmul.f32 %v288, 0.5
        %v294 = vmul.f32 %v291, 0.5
        %v295 = vmul.f32 %v288, 0.70710677
        %v296 = vmul.f32 %v291, 0.70710677
        %v297 = vmul.f32 %v295, %v295
        %v298 = vmin.f32 16.0, %v297
        %v299 = vmul.f32 %v298, 2.1237322e-06
        %v300 = vadd.f32 %v299, 0.00028619796
        %v301 = vmul.f32 %v298, %v300
        %v302 = vadd.f32 %v301, 0.0036580483
        %v303 = vmul.f32 %v298, %v302
        %v304 = vadd.f32 %v303, 0.05243302
        %v305 = vmul.f32 %v298, %v304
        %v306 = vadd.f32 %v305, 0.18741608
        %v307 = vmul.f32 %v298, %v306
        %v308 = vadd.f32 %v307, 1.1283791
        %v309 = vmul.f32 %v295, %v308
        %v310 = vmul.f32 %v298, 3.8918573e-05
        %v311 = vadd.f32 %v310, 0.001143296
        %v312 = vmul.f32 %v298, %v311
        %v313 = vadd.f32 %v312, 0.014752088
        %v314 = vmul.f32 %v298, %v313
        %v315 = vadd.f32 %v314, 0.112945676
        %v316 = vmul.f32 %v298, %v315
        %v317 = vadd.f32 %v316, 0.4994258
        %v318 = vmul.f32 %v298, %v317
        %v319 = vadd.f32 %v318, 1.0
        %v320 = vrcp.pop %v319
        %v321 = vmul.f32 %v319, %v320
        %v322 = vsub.f32 1.0, %v321
        %v323 = vmul.f32 %v320, %v322
        %v324 = vadd.f32 %v320, %v323
        %vm325 = vweird.f32 %v319
        %vm326 = vweird.f32 %v320
        %vm327 = vmor %vm325, %vm326
        %v328 = vsel %vm327, %v320, %v324
        %v329 = vand.u32 2147483647, %v319
        %vm330 = vcmp.eq.f32.partialorder %v329, 8.507059e+37
        %v331 = vand.u32 %v319, 2147483648
        %v332 = vor.u32 1.1754944e-38, %v331
        %v333 = vsel %vm330, %v332, %v328
        %v334 = vmul.f32 %v309, %v333
        %v335 = vmin.f32 %v334, 1.0
        %v336 = vmax.f32 %v335, -1.0
        %v337 = vmul.f32 %v296, %v296
        %v338 = vmin.f32 16.0, %v337
        %v339 = vmul.f32 %v338, 2.1237322e-06
        %v340 = vadd.f32 %v339, 0.00028619796
        %v341 = vmul.f32 %v338, %v340
        %v342 = vadd.f32 %v341, 0.0036580483
        %v343 = vmul.f32 %v338, %v342
        %v344 = vadd.f32 %v343, 0.05243302
        %v345 = vmul.f32 %v338, %v344
        %v346 = vadd.f32 %v345, 0.18741608
        %v347 = vmul.f32 %v338, %v346
        %v348 = vadd.f32 %v347, 1.1283791
        %v349 = vmul.f32 %v296, %v348
        %v350 = vmul.f32 %v338, 3.8918573e-05
        %v351 = vadd.f32 %v350, 0.001143296
        %v352 = vmul.f32 %v338, %v351
        %v353 = vadd.f32 %v352, 0.014752088
        %v354 = vmul.f32 %v338, %v353
        %v355 = vadd.f32 %v354, 0.112945676
        %v356 = vmul.f32 %v338, %v355
        %v357 = vadd.f32 %v356, 0.4994258
        %v358 = vmul.f32 %v338, %v357
        %v359 = vadd.f32 %v358, 1.0
        %v360 = vrcp.pop %v359
        %v361 = vmul.f32 %v359, %v360
        %v362 = vsub.f32 1.0, %v361
        %v363 = vmul.f32 %v360, %v362
        %v364 = vadd.f32 %v360, %v363
        %vm365 = vweird.f32 %v359
        %vm366 = vweird.f32 %v360
        %vm367 = vmor %vm365, %vm366
        %v368 = vsel %vm367, %v360, %v364
        %v369 = vand.u32 2147483647, %v359
        %vm370 = vcmp.eq.f32.partialorder %v369, 8.507059e+37
        %v371 = vand.u32 %v359, 2147483648
        %v372 = vor.u32 1.1754944e-38, %v371
        %v373 = vsel %vm370, %v372, %v368
        %v374 = vmul.f32 %v349, %v373
        %v375 = vmin.f32 %v374, 1.0
        %v376 = vmax.f32 %v375, -1.0
        %v377 = vadd.f32 %v336, 1.0
        %v378 = vadd.f32 %v376, 1.0
        %v379 = vmul.f32 %v293, %v377
        %v380 = vmul.f32 %v294, %v378
        %381 = vst [vmem:[%s207] sm:$0xff] %v379
        %382 = vst [vmem:[%s207 + $0x8] sm:$0xff] %v380
        %s383 = sand.u32 %s97, 1
        %s384 = scalar_lea.sflag [#allocation4], %s383
        %s385 = sand.u32 %s97, 1
        %s386 = smul.addr %s385, 16
        %s387 = scalar_lea.vmem [#allocation7], %s386
        // Predicated region
        $region41: #{tpu_custom_call.1} parent=31 // pred_check
          %p388 = pneg %p107
        $region42: #{tpu_custom_call.1} parent=31 // pred_check_branch
          %390 = sbr.rel (%p388) target = $region44
        $region43: #{tpu_custom_call.1} parent=31 // pred_region
          %392 = vsyncadd %s384, 0
          %s393 = smul.addr %s21, 2
          %s394 = smul.addr %s393, 8
          %s395 = scalar_lea.hbm %s3, %s394
          %s396 = sshll.u32 %s387, 4
          %s397 = int_to_ptr.vmem [resolvable:$true] %s396
          %s398 = sshll.u32 %s395, 4
          %s399 = int_to_ptr.hbm [resolvable:$true] %s398
          %404 = dma.vmem_to_hbm [thread:$0]  %s397, 256, %s399, %s384, 128, 128, 8
        $region44: #{tpu_custom_call.1} parent=31 // pred_fallthru
          _
      $region32: #{tpu_custom_call.1} parent=5 // pred_fallthru
        _
      %p405 = scmp.le.s32.totalorder 2, %s16
      // Predicated region
      $region45: #{tpu_custom_call.1} parent=5 // pred_check
        %p406 = pneg %p405
      $region46: #{tpu_custom_call.1} parent=5 // pred_check_branch
        %408 = sbr.rel (%p406) target = $region48
      $region47: #{tpu_custom_call.1} parent=5 // pred_region
        %s409 = ssub.s32 %s16, 2
        // Predicated region
        $region49: #{tpu_custom_call.1} parent=47 // pred_check
          %p410 = pneg %p113
        $region50: #{tpu_custom_call.1} parent=47 // pred_check_branch
          %412 = sbr.rel (%p410) target = $region52
        $region51: #{tpu_custom_call.1} parent=47 // pred_region
          %s413 = sand.u32 %s98, 1
          %s414 = scalar_lea.sflag [#allocation4], %s413
          %s415 = sand.u32 %s98, 1
          %s416 = smul.addr %s415, 16
          %s417 = scalar_lea.vmem [#allocation7], %s416
          %419 = dma.done %s414, 256
        $region52: #{tpu_custom_call.1} parent=47 // pred_fallthru
          _
      $region48: #{tpu_custom_call.1} parent=5 // pred_fallthru
        _
    $region6: #{tpu_custom_call.1} parent=1 // loop_footer
      %s20 = sadd.s32 1, %s16
    $region7: #{tpu_custom_call.1} parent=1 // loop_footer_branch
      %15 = sbr.rel target = $region3
    $region8: #{tpu_custom_call.1} parent=1 // loop_exit
      _
    %420 = vsyncpa [#allocation3], 1
    %s421 = scalar_lea.sflag [#allocation3], 1
    %422 = vsyncpa %s421, 1
    %423 = vsyncpa [#allocation6], 1
    %424 = vsyncpa [#allocation4], 1
    %s425 = scalar_lea.sflag [#allocation4], 1
    %426 = vsyncpa %s425, 1

</llo_original>
